<compile_context>
chip_gen: v5e
topology: v5e:2x2
jax: 0.10.0
libtpu: 0.0.40
codegen_flags: <defaults>
</compile_context>

<pallas_src>
import functools

import jax
import jax.numpy as jnp
from jax.experimental import pallas as pl
from jax.experimental.pallas import tpu as pltpu


def _round_up(x, m):
    return (x + m - 1) // m * m


def _cdiv(a, b):
    return (a + b - 1) // b


def actor_kernel(x_ref, w1_ref, b1_ref, w2_ref, b2_ref, o_ref):
    # x_ref:  (TILE_B, S)      f32 (cast to MXU dtype in-kernel)
    # w1_ref: (S, H_pad)       bf16 or f32 (resident)
    # b1_ref: (1, H_pad)       f32 (resident, zero-padded)
    # w2_ref: (H_pad, A_pad)   bf16 or f32 (resident, zero-padded rows/cols)
    # b2_ref: (1, A_pad)       f32 (resident, zero-padded)
    # o_ref:  (TILE_B, A_pad)  bf16 (fast path) or f32
    x = x_ref[...].astype(w1_ref.dtype)                                 # in-kernel cast (VPU, free)
    h = jnp.dot(x, w1_ref[...], preferred_element_type=jnp.float32)     # MXU, f32 acc
    h = jnp.maximum(h + b1_ref[...], 0.0)                               # lane-dense bias + ReLU (f32)
    h = h.astype(w2_ref.dtype)                                          # MXU-input cast only
    y = jnp.dot(h, w2_ref[...], preferred_element_type=jnp.float32)     # MXU, f32 acc
    o_ref[...] = (y + b2_ref[...]).astype(o_ref.dtype)                  # lane-dense full-width store


@functools.partial(jax.jit, static_argnames=("tile_b", "use_bf16", "out_dtype"))
def actor_forward(state, w1, b1, w2, b2, *, tile_b=2048, use_bf16=True, out_dtype=None):
    B, S = state.shape
    S_w, H = w1.shape
    H_w, A = w2.shape
    assert S_w == S and H_w == H

    mm_dtype = jnp.bfloat16 if use_bf16 else jnp.float32
    if out_dtype is None:
        # bf16 logits writeback on the fast path halves the dominant HBM stream;
        # exact-f32 path keeps f32 output.
        out_dtype = jnp.bfloat16 if use_bf16 else jnp.float32

    # Lane-dense padded dims (multiples of 128) -> unmasked vregs/stores.
    H_pad = _round_up(H, 128)
    A_pad = _round_up(A, 128)

    # ---- batch tile selection ----
    row_align = 16 if use_bf16 else 8
    tile = max(row_align, min(tile_b, _round_up(B, row_align)))
    num_tiles = _cdiv(B, tile)
    # v7x has 2 TensorCores; give the "parallel" batch axis >= 2 steps when B is big enough.
    if num_tiles == 1 and B >= 256:
        num_tiles = 2
    # Rebalance so the last tile is not mostly zero padding (e.g. B = tile + 8).
    tile = _round_up(_cdiv(B, num_tiles), row_align)
    num_tiles = _cdiv(B, tile)
    B_pad = num_tiles * tile

    # State stays f32 (cast happens in-kernel); pad batch only if needed.
    x = state
    if B_pad != B:
        x = jnp.pad(x, ((0, B_pad - B), (0, 0)))

    # Weights/biases: cast once, zero-pad hidden and action dims (exactness preserved:
    # relu(0 bias + 0 cols) = 0, and zero rows of w2 add nothing).
    w1c = w1.astype(mm_dtype)
    b1r = b1.reshape(1, H).astype(jnp.float32)
    w2c = w2.astype(mm_dtype)
    b2r = b2.reshape(1, A).astype(jnp.float32)
    if H_pad != H:
        w1c = jnp.pad(w1c, ((0, 0), (0, H_pad - H)))
        b1r = jnp.pad(b1r, ((0, 0), (0, H_pad - H)))
        w2c = jnp.pad(w2c, ((0, H_pad - H), (0, 0)))
    if A_pad != A:
        w2c = jnp.pad(w2c, ((0, 0), (0, A_pad - A)))
        b2r = jnp.pad(b2r, ((0, 0), (0, A_pad - A)))

    # Rough VMEM budget, capped at physical VMEM (v7x = 64 MiB per TC).
    mm_bytes = jnp.dtype(mm_dtype).itemsize
    out_bytes = jnp.dtype(out_dtype).itemsize
    vmem_need = (
        2 * tile * max(S, 128) * 4                      # double-buffered f32 state tiles
        + 2 * tile * A_pad * out_bytes                  # double-buffered output tiles
        + tile * H_pad * (4 + mm_bytes)                 # hidden f32 + MXU-dtype copy
        + tile * max(S, 128) * mm_bytes                 # in-kernel cast of x
        + (max(S, 8) * H_pad + H_pad * A_pad) * mm_bytes  # resident weights
        + (H_pad + A_pad) * 8 * 4                       # resident biases (sublane-padded)
    )
    try:
        phys_vmem = int(pltpu.get_tpu_info().vmem_capacity_bytes)
    except Exception:
        phys_vmem = 64 * 1024 * 1024                    # v7x-safe fallback
    vmem_cap = (phys_vmem * 7) // 8                     # leave compiler headroom
    vmem_limit = int(min(vmem_cap, max(32 * 1024 * 1024, 2 * vmem_need)))

    out = pl.pallas_call(
        actor_kernel,
        out_shape=jax.ShapeDtypeStruct((B_pad, A_pad), out_dtype),
        grid=(num_tiles,),
        in_specs=[
            pl.BlockSpec((tile, S), lambda i: (i, 0)),        # state tile marches over batch
            pl.BlockSpec((S, H_pad), lambda i: (0, 0)),       # w1 resident (lane-padded)
            pl.BlockSpec((1, H_pad), lambda i: (0, 0)),       # b1 resident (zero-padded)
            pl.BlockSpec((H_pad, A_pad), lambda i: (0, 0)),   # w2 resident (zero rows/cols)
            pl.BlockSpec((1, A_pad), lambda i: (0, 0)),       # b2 resident (zero-padded)
        ],
        out_specs=pl.BlockSpec((tile, A_pad), lambda i: (i, 0)),
        compiler_params=pltpu.CompilerParams(
            dimension_semantics=("parallel",),                # batch-parallel (v7x 2 TCs)
            vmem_limit_bytes=vmem_limit,
        ),
    )(x, w1c, b1r, w2c, b2r)

    return out[:B, :A]


def actor_reference(state, w1, b1, w2, b2, *, use_bf16=True):
    """Pure-JAX reference mirroring the kernel's matmul dtype handling."""
    dt = jnp.bfloat16 if use_bf16 else jnp.float32
    h = jnp.dot(state.astype(dt), w1.astype(dt), preferred_element_type=jnp.float32)
    h = jnp.maximum(h + b1.reshape(1, -1), 0.0)
    y = jnp.dot(h.astype(dt), w2.astype(dt), preferred_element_type=jnp.float32)
    return y + b2.reshape(1, -1)


def init_actor_params(key, state_size, action_size, hidden_size=64):
    # Deterministic init mimicking PyTorch nn.Linear default:
    # U(-1/sqrt(fan_in), 1/sqrt(fan_in)) for weight and bias of each layer.
    k1, k2, k3, k4 = jax.random.split(key, 4)
    bound1 = 1.0 / jnp.sqrt(state_size)
    bound2 = 1.0 / jnp.sqrt(hidden_size)
    w1 = jax.random.uniform(k1, (state_size, hidden_size), jnp.float32, -bound1, bound1)
    b1 = jax.random.uniform(k2, (1, hidden_size), jnp.float32, -bound1, bound1)
    w2 = jax.random.uniform(k3, (hidden_size, action_size), jnp.float32, -bound2, bound2)
    b2 = jax.random.uniform(k4, (1, action_size), jnp.float32, -bound2, bound2)
    return w1, b1, w2, b2


if __name__ == "__main__":
    key = jax.random.PRNGKey(0)
    k_params, k_state, k_state2 = jax.random.split(key, 3)

    batch = 8
    state_size = 16
    hidden_size = 64
    action_size = 4

    w1, b1, w2, b2 = init_actor_params(k_params, state_size, action_size, hidden_size)
    state = jax.random.normal(k_state, (batch, state_size), jnp.float32)

    # 1) f32 path: exact PyTorch semantics (f32 matmuls, f32 output).
    y_f32 = jax.block_until_ready(
        actor_forward(state, w1, b1, w2, b2, use_bf16=False))
    y_ref_f32 = actor_reference(state, w1, b1, w2, b2, use_bf16=False)
    assert y_f32.shape == (batch, action_size)
    assert jnp.allclose(y_f32, y_ref_f32, atol=1e-5, rtol=1e-5)

    # 2) bf16-MXU fast path (default): bf16 inputs to the MXU, f32 accumulation,
    #    bf16 logits writeback. Note: intentionally not bit-exact vs PyTorch f32.
    y_bf16 = jax.block_until_ready(
        actor_forward(state, w1, b1, w2, b2, use_bf16=True))
    assert y_bf16.shape == (batch, action_size)
    assert y_bf16.dtype == jnp.bfloat16
    y_ref_bf16 = actor_reference(state, w1, b1, w2, b2, use_bf16=True)
    assert jnp.allclose(y_bf16.astype(jnp.float32), y_ref_bf16, atol=2e-2, rtol=2e-2)
    assert jnp.allclose(y_bf16.astype(jnp.float32), y_ref_f32, atol=5e-2, rtol=5e-2)

    # 3) Multi-tile path: exercises grid > 1 (parallel batch axis), tile rebalancing,
    #    and zero-row batch padding.
    big_state = jax.random.normal(k_state2, (300, state_size), jnp.float32)
    y_big = jax.block_until_ready(
        actor_forward(big_state, w1, b1, w2, b2, tile_b=128, use_bf16=True))
    y_big_ref = actor_reference(big_state, w1, b1, w2, b2, use_bf16=True)
    assert y_big.shape == (300, action_size)
    assert jnp.allclose(y_big.astype(jnp.float32), y_big_ref, atol=2e-2, rtol=2e-2)

    print("KERNEL_OK")
</pallas_src>

<mosaic_0001>
module attributes {stable_mosaic.version = 11 : i64} {
  func.func @actor_kernel(%arg0: i32, %arg1: memref<8x16xf32, #tpu.memory_space<vmem>>, %arg2: memref<16x128xf32, #tpu.memory_space<vmem>>, %arg3: memref<1x128xf32, #tpu.memory_space<vmem>>, %arg4: memref<128x128xf32, #tpu.memory_space<vmem>>, %arg5: memref<1x128xf32, #tpu.memory_space<vmem>>, %arg6: memref<8x128xf32, #tpu.memory_space<vmem>>) attributes {dimension_semantics = [#tpu.dimension_semantics<parallel>], iteration_bounds = array<i64: 1>, scalar_prefetch = 0 : i64, scratch_operands = 0 : i64, tpu.core_type = #tpu.core_type<tc>, window_params = [{transform_indices = @transform_0, window_bounds = array<i64: 8, 16>}, {pipeline_mode = #tpu.pipeline_mode<synchronous>, transform_indices = @transform_1, window_bounds = array<i64: 16, 128>}, {pipeline_mode = #tpu.pipeline_mode<synchronous>, transform_indices = @transform_2, window_bounds = array<i64: 1, 128>}, {pipeline_mode = #tpu.pipeline_mode<synchronous>, transform_indices = @transform_3, window_bounds = array<i64: 128, 128>}, {pipeline_mode = #tpu.pipeline_mode<synchronous>, transform_indices = @transform_4, window_bounds = array<i64: 1, 128>}, {transform_indices = @transform_5, window_bounds = array<i64: 8, 128>}]} {
    %c0 = arith.constant 0 : index
    %c0_0 = arith.constant 0 : index
    %0 = vector.load %arg1[%c0, %c0_0] : memref<8x16xf32, #tpu.memory_space<vmem>>, vector<8x16xf32>
    %c0_1 = arith.constant 0 : index
    %c0_2 = arith.constant 0 : index
    %1 = vector.load %arg2[%c0_1, %c0_2] : memref<16x128xf32, #tpu.memory_space<vmem>>, vector<16x128xf32>
    %cst = arith.constant dense<0.000000e+00> : vector<8x128xf32>
    %2 = tpu.matmul %0, %1, %cst {dimension_numbers = #tpu.dot_dimension_numbers<[1], [0], [0], [1], [0, 0, 1, 1], [], []>} : vector<8x16xf32>, vector<16x128xf32>, vector<8x128xf32> -> vector<8x128xf32>
    %c0_3 = arith.constant 0 : index
    %c0_4 = arith.constant 0 : index
    %3 = vector.load %arg3[%c0_3, %c0_4] : memref<1x128xf32, #tpu.memory_space<vmem>>, vector<1x128xf32>
    %4 = vector.broadcast %3 : vector<1x128xf32> to vector<8x128xf32>
    %5 = arith.addf %2, %4 : vector<8x128xf32>
    %cst_5 = arith.constant 0.000000e+00 : f32
    %6 = vector.broadcast %cst_5 : f32 to vector<8x128xf32>
    %7 = arith.maximumf %5, %6 : vector<8x128xf32>
    %c0_6 = arith.constant 0 : index
    %c0_7 = arith.constant 0 : index
    %8 = vector.load %arg4[%c0_6, %c0_7] : memref<128x128xf32, #tpu.memory_space<vmem>>, vector<128x128xf32>
    %cst_8 = arith.constant dense<0.000000e+00> : vector<8x128xf32>
    %9 = tpu.matmul %7, %8, %cst_8 {dimension_numbers = #tpu.dot_dimension_numbers<[1], [0], [0], [1], [0, 0, 1, 1], [], []>} : vector<8x128xf32>, vector<128x128xf32>, vector<8x128xf32> -> vector<8x128xf32>
    %c0_9 = arith.constant 0 : index
    %c0_10 = arith.constant 0 : index
    %10 = vector.load %arg5[%c0_9, %c0_10] : memref<1x128xf32, #tpu.memory_space<vmem>>, vector<1x128xf32>
    %11 = vector.broadcast %10 : vector<1x128xf32> to vector<8x128xf32>
    %12 = arith.addf %9, %11 : vector<8x128xf32>
    %c0_11 = arith.constant 0 : index
    %c0_12 = arith.constant 0 : index
    %13 = vector.load %arg6[%c0_11, %c0_12] : memref<8x128xf32, #tpu.memory_space<vmem>>, vector<8x128xf32>
    tpu.vector_store %arg6[%c0_11, %c0_12], %12 {strides = array<i32>} : memref<8x128xf32, #tpu.memory_space<vmem>>, vector<8x128xf32>,
    return
  }
  func.func @transform_0(%arg0: i32) -> (i32, i32) {
    %c0_i32 = arith.constant 0 : i32
    %c0_i32_0 = arith.constant 0 : i32
    return %arg0, %c0_i32 : i32, i32
  }
  func.func @transform_1(%arg0: i32) -> (i32, i32) {
    %c0_i32 = arith.constant 0 : i32
    %c0_i32_0 = arith.constant 0 : i32
    %c0_i32_1 = arith.constant 0 : i32
    return %c0_i32, %c0_i32_0 : i32, i32
  }
  func.func @transform_2(%arg0: i32) -> (i32, i32) {
    %c0_i32 = arith.constant 0 : i32
    %c0_i32_0 = arith.constant 0 : i32
    %c0_i32_1 = arith.constant 0 : i32
    return %c0_i32, %c0_i32_0 : i32, i32
  }
  func.func @transform_3(%arg0: i32) -> (i32, i32) {
    %c0_i32 = arith.constant 0 : i32
    %c0_i32_0 = arith.constant 0 : i32
    %c0_i32_1 = arith.constant 0 : i32
    return %c0_i32, %c0_i32_0 : i32, i32
  }
  func.func @transform_4(%arg0: i32) -> (i32, i32) {
    %c0_i32 = arith.constant 0 : i32
    %c0_i32_0 = arith.constant 0 : i32
    %c0_i32_1 = arith.constant 0 : i32
    return %c0_i32, %c0_i32_0 : i32, i32
  }
  func.func @transform_5(%arg0: i32) -> (i32, i32) {
    %c0_i32 = arith.constant 0 : i32
    %c0_i32_0 = arith.constant 0 : i32
    return %arg0, %c0_i32 : i32, i32
  }
}

</mosaic_0001>

<llo_original>
// kernel: actor_forward.1
$region0: #{actor_forward.1}
  #allocation0 [shape = 'u32[]', space=smem, size = 0x4, offset = 0x4, fixed_abs, tag = 'smem constant byte address 0x4 - core index']
  #allocation1 [shape = 'u32[72,128]{1,0:T(1,128)}', space=vmem, size = 0x9000, scoped, tag = 'internal scratch']
  %s0 = inlined_call_operand.vmem [shape: f32[8,16], index: 0, kind: input, shape index: {}]
  %s1 = inlined_call_operand.vmem [shape: f32[16,128], index: 1, kind: input, shape index: {}]
  %s2 = inlined_call_operand.vmem [shape: f32[1,128], index: 2, kind: input, shape index: {}]
  %s3 = inlined_call_operand.vmem [shape: f32[128,128], index: 3, kind: input, shape index: {}]
  %s4 = inlined_call_operand.vmem [shape: f32[1,128], index: 4, kind: input, shape index: {}]
  %s5 = inlined_call_operand.vmem [shape: f32[8,128], index: 5, kind: output, shape index: {}]
  %s6 = sld [smem:[#allocation0]]
  $region30: #{actor_forward.1} parent=0
    _
  %s8 = ssub.s32 1, %s6
  %s9 = scalar_select 0, %s8, %s6
  // Predicated region
  $region2: #{actor_forward.1} parent=0 // pred_check
    _
  $region3: #{actor_forward.1} parent=0 // pred_check_branch
    %11 = sbr.rel (0) target = $region5
  $region4: #{actor_forward.1} parent=0 // pred_region
    _
  $region5: #{actor_forward.1} parent=0 // pred_fallthru
    _
  // Predicated region
  $region6: #{actor_forward.1} parent=0 // pred_check
    _
  $region7: #{actor_forward.1} parent=0 // pred_check_branch
    %13 = sbr.rel (0) target = $region9
  $region8: #{actor_forward.1} parent=0 // pred_region
    _
  $region9: #{actor_forward.1} parent=0 // pred_fallthru
    _
  // Predicated region
  $region10: #{actor_forward.1} parent=0 // pred_check
    _
  $region11: #{actor_forward.1} parent=0 // pred_check_branch
    %15 = sbr.rel (0) target = $region13
  $region12: #{actor_forward.1} parent=0 // pred_region
    _
  $region13: #{actor_forward.1} parent=0 // pred_fallthru
    _
  // Predicated region
  $region14: #{actor_forward.1} parent=0 // pred_check
    _
  $region15: #{actor_forward.1} parent=0 // pred_check_branch
    %17 = sbr.rel (0) target = $region17
  $region16: #{actor_forward.1} parent=0 // pred_region
    _
  $region17: #{actor_forward.1} parent=0 // pred_fallthru
    _
  // Predicated region
  $region18: #{actor_forward.1} parent=0 // pred_check
    _
  $region19: #{actor_forward.1} parent=0 // pred_check_branch
    %19 = sbr.rel (0) target = $region21
  $region20: #{actor_forward.1} parent=0 // pred_region
    _
  $region21: #{actor_forward.1} parent=0 // pred_fallthru
    _
  %v20 = vld [vmem:[%s0] sm:$0xff]
  %v21 = vld [vmem:[%s1] sm:$0xff]
  %v22 = vld [vmem:[%s1 + $0x8] sm:$0xff]
  %v23 = vld [vmem:[%s2] sm:$0x1]
  %v25 = vperm.slane %v23, 0
  %vm27 = vcmask 130048
  %v29 = vsel %vm27, %v20, 0
  %31 = vmatpush.msra.mxu0 0.0
  %32 = vmatpush.msra.mxu0 0.0
  %33 = vmatpush.msra.mxu0 0.0
  %34 = vmatpush.msra.mxu0 0.0
  %35 = vmatpush.msra.mxu0 0.0
  %36 = vmatpush.msra.mxu0 0.0
  %37 = vmatpush.msra.mxu0 0.0
  %38 = vmatpush.msra.mxu0 0.0
  %39 = vmatpush.msra.mxu0 0.0
  %40 = vmatpush.msra.mxu0 0.0
  %41 = vmatpush.msra.mxu0 0.0
  %42 = vmatpush.msra.mxu0 0.0
  %43 = vmatpush.msra.mxu0 0.0
  %44 = vmatpush.msra.mxu0 0.0
  %45 = vmatpush.msra.mxu0 %v22
  %46 = vmatpush.msra.mxu0 %v21
  %47 = vmatmul.f32.gmra.mxu0 %v29
  %v48 = vpop.f32.mrf.mxu0
  %v49 = vadd.f32 %v25, %v48
  %50 = vdwg.mxu0
  %v51 = vmax.f32 %v49, 0.0
  %v52 = vld [vmem:[%s3] sm:$0xff]
  %v53 = vld [vmem:[%s3 + $0x8] sm:$0xff]
  %v54 = vld [vmem:[%s3 + $0x10] sm:$0xff]
  %v55 = vld [vmem:[%s3 + $0x18] sm:$0xff]
  %v56 = vld [vmem:[%s3 + $0x20] sm:$0xff]
  %v57 = vld [vmem:[%s3 + $0x28] sm:$0xff]
  %v58 = vld [vmem:[%s3 + $0x30] sm:$0xff]
  %v59 = vld [vmem:[%s3 + $0x38] sm:$0xff]
  %v60 = vld [vmem:[%s3 + $0x40] sm:$0xff]
  %v61 = vld [vmem:[%s3 + $0x48] sm:$0xff]
  %v62 = vld [vmem:[%s3 + $0x50] sm:$0xff]
  %v63 = vld [vmem:[%s3 + $0x58] sm:$0xff]
  %v64 = vld [vmem:[%s3 + $0x60] sm:$0xff]
  %v65 = vld [vmem:[%s3 + $0x68] sm:$0xff]
  %v66 = vld [vmem:[%s3 + $0x70] sm:$0xff]
  %v67 = vld [vmem:[%s3 + $0x78] sm:$0xff]
  %v68 = vld [vmem:[%s4] sm:$0x1]
  %v70 = vperm.slane %v68, 0
  %72 = vmatpush.msra.mxu0 %v67
  %73 = vmatpush.msra.mxu0 %v66
  %74 = vmatpush.msra.mxu0 %v65
  %75 = vmatpush.msra.mxu0 %v64
  %76 = vmatpush.msra.mxu0 %v63
  %77 = vmatpush.msra.mxu0 %v62
  %78 = vmatpush.msra.mxu0 %v61
  %79 = vmatpush.msra.mxu0 %v60
  %80 = vmatpush.msra.mxu0 %v59
  %81 = vmatpush.msra.mxu0 %v58
  %82 = vmatpush.msra.mxu0 %v57
  %83 = vmatpush.msra.mxu0 %v56
  %84 = vmatpush.msra.mxu0 %v55
  %85 = vmatpush.msra.mxu0 %v54
  %86 = vmatpush.msra.mxu0 %v53
  %87 = vmatpush.msra.mxu0 %v52
  %88 = vmatmul.f32.gmra.mxu0 %v51
  %v89 = vpop.f32.mrf.mxu0
  %v90 = vadd.f32 %v70, %v89
  %91 = vdwg.mxu0
  %92 = vst [vmem:[%s5] sm:$0xff] %v90
  // Predicated region
  $region22: #{actor_forward.1} parent=0 // pred_check
    _
  $region23: #{actor_forward.1} parent=0 // pred_check_branch
    %94 = sbr.rel (0) target = $region25
  $region24: #{actor_forward.1} parent=0 // pred_region
    _
  $region25: #{actor_forward.1} parent=0 // pred_fallthru
    _
  // Predicated region
  $region26: #{actor_forward.1} parent=0 // pred_check
    _
  $region27: #{actor_forward.1} parent=0 // pred_check_branch
    %96 = sbr.rel (0) target = $region29
  $region28: #{actor_forward.1} parent=0 // pred_region
    _
  $region29: #{actor_forward.1} parent=0 // pred_fallthru
    _

</llo_original>
